<compile_context>
chip_gen: v7x
topology: tpu7x:2x2x1
jax: 0.10.0
libtpu: 0.0.40
codegen_flags: <defaults>
</compile_context>

<pallas_src>
import functools

import jax
import jax.numpy as jnp
from jax.experimental import pallas as pl
from jax.experimental.pallas import tpu as pltpu


def _round_up(x, m):
    return (x + m - 1) // m * m


def _vmem_capacity_bytes():
    try:
        cap = getattr(pltpu.get_tpu_info(), "vmem_capacity_bytes", None)
        if cap:
            return int(cap)
    except Exception:
        pass
    return 64 * 1024 * 1024  # conservative fallback (v7x per-TC VMEM)


# ---------------------------------------------------------------------------
# Tiny excitation MLP, traced inside the fused kernel.
# ---------------------------------------------------------------------------
def _mlp_in_kernel(pooled, w1t, b1, w2t, b2):
    """pooled: (1, C) f32; w1t: (C, S); w2t: (S, C).  Returns sigmoid scale (1, C)."""
    C, S = w1t.shape
    if C * S >= 4096:
        # Large channel counts: use the (otherwise idle) MXU; avoids the (1,C,S)
        # f32 broadcast intermediate and its vreg/VMEM spill.
        s1 = jnp.dot(pooled, w1t, preferred_element_type=jnp.float32) + b1
        s1 = jnp.maximum(s1, 0.0)
        s2 = jnp.dot(s1, w2t, preferred_element_type=jnp.float32) + b2
    else:
        # Tiny MLP: the broadcast intermediate is a handful of vregs; stay on VPU.
        s1 = jnp.sum(pooled[:, :, None] * w1t[None, :, :], axis=1) + b1
        s1 = jnp.maximum(s1, 0.0)
        s2 = jnp.sum(s1[:, :, None] * w2t[None, :, :], axis=1) + b2
    return jax.nn.sigmoid(s2)


# ---------------------------------------------------------------------------
# Fused single-pass kernel: whole (1, C, HW) image resident per grid step.
# ---------------------------------------------------------------------------
def _se_fused_kernel(x_ref, w1t_ref, b1_ref, w2t_ref, b2_ref, o_ref, *, inv_hw):
    xf = x_ref[...].astype(jnp.float32)                         # (1, C, HW)
    pooled = jnp.sum(xf, axis=2) * inv_hw                       # (1, C) mean, f32
    s2 = _mlp_in_kernel(pooled, w1t_ref[...], b1_ref[...],
                        w2t_ref[...], b2_ref[...])              # (1, C) f32
    o_ref[...] = (xf * s2[:, :, None]).astype(o_ref.dtype)


# ---------------------------------------------------------------------------
# Two-pass fallback, pass 1 (HW-tiled): partial channel sums with deferred
# cross-lane reduce; grid (N, P, T/P), last axis is the reduction.
# ---------------------------------------------------------------------------
def _se_pool_hw_kernel(x_ref, sum_ref, acc_ref):
    t = pl.program_id(2)

    @pl.when(t == 0)
    def _():
        acc_ref[...] = jnp.zeros_like(acc_ref)

    thw = x_ref.shape[2]
    # Accumulate whole 128-lane groups with pure VPU vreg adds (static unroll);
    # the single expensive lane reduce + relayout is deferred to the last tile.
    for g in range(thw // 128):
        acc_ref[...] += x_ref[0, :, g * 128:(g + 1) * 128].astype(jnp.float32)

    @pl.when(t == pl.num_programs(2) - 1)
    def _():
        sum_ref[...] = jnp.sum(acc_ref[...], axis=1).reshape(1, 1, -1)   # (1,1,C)


# ---------------------------------------------------------------------------
# Two-pass fallback, pass 1 (C-tiled, HW not a multiple of 128): each block
# holds the full HW extent for a slice of channels -> one-shot reduce.
# ---------------------------------------------------------------------------
def _se_pool_c_kernel(x_ref, sum_ref):
    xf = x_ref[...].astype(jnp.float32)                          # (1, tc, HW)
    sum_ref[...] = jnp.sum(xf, axis=2).reshape(1, 1, -1)         # (1, 1, tc)


# ---------------------------------------------------------------------------
# Two-pass fallback, pass 2: out = x * scale (f32 multiply, cast at the store).
# ---------------------------------------------------------------------------
def _se_scale_kernel(x_ref, s2_ref, o_ref):
    c = x_ref.shape[1]
    scale = s2_ref[...].reshape(1, c, 1)                         # f32
    o_ref[...] = (x_ref[...].astype(jnp.float32) * scale).astype(o_ref.dtype)


def _pick_hw_tile(hw, c_pad, dtype_bytes, max_tile_bytes):
    """Largest HW tile that is a multiple of 128, divides HW, and keeps one
    (c_pad, thw) slab under max_tile_bytes.  Only used when hw % 128 == 0."""
    max_lanes = (max_tile_bytes // max(1, c_pad * dtype_bytes)) // 128 * 128
    max_lanes = max(128, max_lanes)
    if max_lanes >= hw:
        return hw
    best = 128
    for d in range(256, max_lanes + 1, 128):
        if hw % d == 0:
            best = d
    return best


def squeeze_excitation(x_nchw, w1, b1, w2, b2, *, hw_tile=None, c_tile=None,
                       force_two_pass=False):
    """x_nchw: (N, C, H, W) (any float dtype); w1: (S, C); b1: (S,);
    w2: (C, S); b2: (C,).  Returns (N, C, H, W) in the dtype of x_nchw."""
    N, C, H, W = x_nchw.shape
    S = w1.shape[0]
    HW = H * W
    dtype = x_nchw.dtype
    dtype_bytes = jnp.dtype(dtype).itemsize

    # View as (N, C, HW); NO dtype cast (keep HBM traffic in the native dtype).
    x = x_nchw.reshape(N, C, HW)

    w1f = jnp.asarray(w1, jnp.float32)                           # (S, C)
    b1f = jnp.asarray(b1, jnp.float32)                           # (S,)
    w2f = jnp.asarray(w2, jnp.float32)                           # (C, S)
    b2f = jnp.asarray(b2, jnp.float32)                           # (C,)

    vmem_cap = _vmem_capacity_bytes()
    ceil_limit = int(0.6 * vmem_cap)         # generation-aware scoped-VMEM ceiling
    inv_hw = 1.0 / float(HW)

    c_pad = _round_up(C, 8)
    hw_pad = _round_up(HW, 128)
    slab_native = c_pad * hw_pad * dtype_bytes
    slab_f32 = c_pad * hw_pad * 4
    param_bytes = 4 * 2 * (C * S + S + S * C + C)   # double-buffered f32 params
    # Pessimistic fused budget: double-buffered in+out + f32 temps + params.
    fused_need = 4 * slab_native + 2 * slab_f32 + param_bytes + (1 << 20)

    # --------------------------- fused single pass ---------------------------
    if hw_tile is None and not force_two_pass and fused_need <= int(0.55 * vmem_cap):
        out = pl.pallas_call(
            functools.partial(_se_fused_kernel, inv_hw=inv_hw),
            out_shape=jax.ShapeDtypeStruct((N, C, HW), dtype),
            grid_spec=pltpu.PrefetchScalarGridSpec(
                num_scalar_prefetch=0,
                grid=(N,),
                in_specs=[
                    pl.BlockSpec((1, C, HW), lambda n: (n, 0, 0)),   # x (resident)
                    pl.BlockSpec((C, S), lambda n: (0, 0)),          # W1^T
                    pl.BlockSpec((1, S), lambda n: (0, 0)),          # b1
                    pl.BlockSpec((S, C), lambda n: (0, 0)),          # W2^T
                    pl.BlockSpec((1, C), lambda n: (0, 0)),          # b2
                ],
                out_specs=pl.BlockSpec((1, C, HW), lambda n: (n, 0, 0)),
            ),
            compiler_params=pltpu.CompilerParams(
                dimension_semantics=("parallel",),
                vmem_limit_bytes=max(8 << 20, min(ceil_limit, fused_need))),
        )(x, w1f.T, b1f.reshape(1, S), w2f.T, b2f.reshape(1, C))
        return out.reshape(N, C, H, W)

    # ----------------------------- two-pass path -----------------------------
    max_tile_bytes = max(2 << 20, vmem_cap // 12)   # ~10.7 MiB v5e/v6e, ~5.3 MiB v7x

    if hw_tile is not None or HW % 128 == 0:
        # ---- HW-tiled streaming reduction (lane-dense 128-multiple tiles) ----
        thw = hw_tile if hw_tile is not None else _pick_hw_tile(
            HW, c_pad, dtype_bytes, max_tile_bytes)
        assert HW % thw == 0 and thw % 128 == 0, \
            "hw_tile must divide H*W and be a multiple of 128"
        T = HW // thw

        # Batch-1: split the reduction over a second 'parallel' axis so both
        # TensorCores (v7x megacore) work on pass 1; partials combined in JAX.
        P = 2 if (N == 1 and T >= 2 and T % 2 == 0) else 1
        Tp = T // P

        tile_native = c_pad * thw * dtype_bytes
        tile_f32 = c_pad * thw * 4
        acc_bytes = c_pad * 128 * 4
        lim1 = max(8 << 20, min(ceil_limit,
                                2 * tile_native + 2 * tile_f32 + acc_bytes + (2 << 20)))
        lim2 = max(8 << 20, min(ceil_limit,
                                4 * tile_native + 2 * tile_f32 + (2 << 20)))

        partial = pl.pallas_call(
            _se_pool_hw_kernel,
            out_shape=jax.ShapeDtypeStruct((N, P, C), jnp.float32),
            grid_spec=pltpu.PrefetchScalarGridSpec(
                num_scalar_prefetch=0,
                grid=(N, P, Tp),
                in_specs=[pl.BlockSpec(
                    (1, C, thw), lambda n, p, t, Tp=Tp: (n, 0, p * Tp + t))],
                out_specs=pl.BlockSpec((1, 1, C), lambda n, p, t: (n, p, 0)),
                scratch_shapes=[pltpu.VMEM((C, 128), jnp.float32)],
            ),
            compiler_params=pltpu.CompilerParams(
                dimension_semantics=("parallel", "parallel", "arbitrary"),
                vmem_limit_bytes=lim1),
        )(x)

        # Tiny excitation MLP hoisted to plain JAX: weights never enter kernel VMEM.
        pooled = jnp.sum(partial, axis=1) * inv_hw                   # (N, C) f32
        s1 = jnp.maximum(pooled @ w1f.T + b1f, 0.0)                  # (N, S)
        s2 = jax.nn.sigmoid(s1 @ w2f.T + b2f)                        # (N, C) f32

        out = pl.pallas_call(
            _se_scale_kernel,
            out_shape=jax.ShapeDtypeStruct((N, C, HW), dtype),
            grid_spec=pltpu.PrefetchScalarGridSpec(
                num_scalar_prefetch=0,
                grid=(N, T),
                in_specs=[pl.BlockSpec((1, C, thw), lambda n, t: (n, 0, t)),
                          pl.BlockSpec((1, C), lambda n, t: (n, 0))],
                out_specs=pl.BlockSpec((1, C, thw), lambda n, t: (n, 0, t)),
            ),
            compiler_params=pltpu.CompilerParams(
                dimension_semantics=("parallel", "parallel"),
                vmem_limit_bytes=lim2),
        )(x, s2)
        return out.reshape(N, C, H, W)

    # ---- HW not a multiple of 128: tile over channels, full-HW blocks ----
    # TODO(synk): a channels-last (N, HW, C) layout (C on lanes) would give
    # unmasked lane-dense stores for CNN-typical spatial sizes (49/196/784/3136).
    if c_tile is not None:
        tc = c_tile
    elif C % 8 != 0:
        tc = C
    else:
        per_c_bytes = hw_pad * dtype_bytes
        budget_c = max(8, (max_tile_bytes // max(1, per_c_bytes)) // 8 * 8)
        if budget_c >= C:
            tc = C
        else:
            tc = 8
            for d in range(16, budget_c + 1, 8):
                if C % d == 0:
                    tc = d
    assert C % tc == 0 and (tc % 8 == 0 or tc == C), \
        "c_tile must divide C and be a multiple of 8 (or C itself)"
    CT = C // tc

    tile_native = _round_up(tc, 8) * hw_pad * dtype_bytes
    tile_f32 = _round_up(tc, 8) * hw_pad * 4
    lim1 = max(8 << 20, min(ceil_limit, 2 * tile_native + 2 * tile_f32 + (2 << 20)))
    lim2 = max(8 << 20, min(ceil_limit, 4 * tile_native + 2 * tile_f32 + (2 << 20)))

    sums = pl.pallas_call(
        _se_pool_c_kernel,
        out_shape=jax.ShapeDtypeStruct((N, CT, tc), jnp.float32),
        grid_spec=pltpu.PrefetchScalarGridSpec(
            num_scalar_prefetch=0,
            grid=(N, CT),
            in_specs=[pl.BlockSpec((1, tc, HW), lambda n, c: (n, c, 0))],
            out_specs=pl.BlockSpec((1, 1, tc), lambda n, c: (n, c, 0)),
        ),
        compiler_params=pltpu.CompilerParams(
            dimension_semantics=("parallel", "parallel"),
            vmem_limit_bytes=lim1),
    )(x)

    pooled = sums.reshape(N, C) * inv_hw                             # (N, C) f32
    s1 = jnp.maximum(pooled @ w1f.T + b1f, 0.0)
    s2 = jax.nn.sigmoid(s1 @ w2f.T + b2f).reshape(N, CT, tc)         # f32

    out = pl.pallas_call(
        _se_scale_kernel,
        out_shape=jax.ShapeDtypeStruct((N, C, HW), dtype),
        grid_spec=pltpu.PrefetchScalarGridSpec(
            num_scalar_prefetch=0,
            grid=(N, CT),
            in_specs=[pl.BlockSpec((1, tc, HW), lambda n, c: (n, c, 0)),
                      pl.BlockSpec((1, 1, tc), lambda n, c: (n, c, 0))],
            out_specs=pl.BlockSpec((1, tc, HW), lambda n, c: (n, c, 0)),
        ),
        compiler_params=pltpu.CompilerParams(
            dimension_semantics=("parallel", "parallel"),
            vmem_limit_bytes=lim2),
    )(x, s2)
    return out.reshape(N, C, H, W)


def _reference(x_nchw, w1, b1, w2, b2):
    # Pure-JAX reference mirroring the PyTorch module (computed in f32).
    xf = x_nchw.astype(jnp.float32)
    pooled = jnp.mean(xf, axis=(2, 3))                               # (N, C)
    s1 = jnp.maximum(pooled @ w1.T + b1, 0.0)                        # (N, S)
    s2 = jax.nn.sigmoid(s1 @ w2.T + b2)                              # (N, C)
    return xf * s2[:, :, None, None]


if __name__ == "__main__":
    # SqueezeExcitation(input_channels=32, squeeze_channels=8)
    N, C, H, W = 2, 32, 16, 16
    S = 8

    key = jax.random.PRNGKey(0)
    kx, kw1, kb1, kw2, kb2 = jax.random.split(key, 5)

    x = jax.random.normal(kx, (N, C, H, W), dtype=jnp.float32)
    # Conv2d(C, S, 1) weight is (S, C, 1, 1) -> use (S, C); deterministic init.
    w1 = jax.random.normal(kw1, (S, C), dtype=jnp.float32) * 0.5
    b1 = jax.random.normal(kb1, (S,), dtype=jnp.float32) * 0.1
    w2 = jax.random.normal(kw2, (C, S), dtype=jnp.float32) * 0.5
    b2 = jax.random.normal(kb2, (C,), dtype=jnp.float32) * 0.1

    ref = _reference(x, w1, b1, w2, b2)

    # 1) Fused single-pass path (image resident in VMEM).
    out = jax.block_until_ready(squeeze_excitation(x, w1, b1, w2, b2))
    assert out.shape == (N, C, H, W) and out.dtype == jnp.float32
    assert jnp.allclose(out, ref, atol=1e-5, rtol=1e-5), "fused f32 mismatch"

    # 2) Two-pass HW-tiled path with a real multi-tile accumulator (T = 2).
    out_t = jax.block_until_ready(
        squeeze_excitation(x, w1, b1, w2, b2, hw_tile=128, force_two_pass=True))
    assert jnp.allclose(out_t, ref, atol=1e-5, rtol=1e-5), "hw-tiled mismatch"

    # 3) Batch-1 HW-tiled path: pass-1 reduction split across TensorCores.
    ref1 = _reference(x[:1], w1, b1, w2, b2)
    out1 = jax.block_until_ready(
        squeeze_excitation(x[:1], w1, b1, w2, b2, hw_tile=128, force_two_pass=True))
    assert jnp.allclose(out1, ref1, atol=1e-5, rtol=1e-5), "core-split mismatch"

    # 4) HW not a multiple of 128 (CNN-typical 7x7): channel-tiled two-pass path.
    x7 = jax.random.normal(kx, (N, C, 7, 7), dtype=jnp.float32)
    ref7 = _reference(x7, w1, b1, w2, b2)
    out7 = jax.block_until_ready(
        squeeze_excitation(x7, w1, b1, w2, b2, force_two_pass=True, c_tile=8))
    assert jnp.allclose(out7, ref7, atol=1e-5, rtol=1e-5), "c-tiled mismatch"

    # 5) bf16 input stays bf16 end-to-end (native-dtype streaming, f32 scale).
    x_bf16 = x.astype(jnp.bfloat16)
    ref_bf16 = _reference(x_bf16.astype(jnp.float32), w1, b1, w2, b2)
    out_bf16 = jax.block_until_ready(squeeze_excitation(x_bf16, w1, b1, w2, b2))
    assert out_bf16.dtype == jnp.bfloat16
    assert jnp.allclose(out_bf16.astype(jnp.float32), ref_bf16,
                        atol=5e-2, rtol=5e-2), "bf16 mismatch"

    print("KERNEL_OK")
</pallas_src>

<mosaic_0001>
module attributes {stable_mosaic.version = 11 : i64} {
  func.func @_se_fused_kernel(%arg0: i32, %arg1: memref<1x32x256xf32, #tpu.memory_space<vmem>>, %arg2: memref<32x8xf32, #tpu.memory_space<vmem>>, %arg3: memref<1x8xf32, #tpu.memory_space<vmem>>, %arg4: memref<8x32xf32, #tpu.memory_space<vmem>>, %arg5: memref<1x32xf32, #tpu.memory_space<vmem>>, %arg6: memref<1x32x256xf32, #tpu.memory_space<vmem>>) attributes {dimension_semantics = [#tpu.dimension_semantics<parallel>], iteration_bounds = array<i64: 2>, scalar_prefetch = 0 : i64, scratch_operands = 0 : i64, tpu.core_type = #tpu.core_type<tc>, window_params = [{transform_indices = @transform_0, window_bounds = array<i64: 1, 32, 256>}, {pipeline_mode = #tpu.pipeline_mode<synchronous>, transform_indices = @transform_1, window_bounds = array<i64: 32, 8>}, {pipeline_mode = #tpu.pipeline_mode<synchronous>, transform_indices = @transform_2, window_bounds = array<i64: 1, 8>}, {pipeline_mode = #tpu.pipeline_mode<synchronous>, transform_indices = @transform_3, window_bounds = array<i64: 8, 32>}, {pipeline_mode = #tpu.pipeline_mode<synchronous>, transform_indices = @transform_4, window_bounds = array<i64: 1, 32>}, {transform_indices = @transform_5, window_bounds = array<i64: 1, 32, 256>}]} {
    %c0 = arith.constant 0 : index
    %c0_0 = arith.constant 0 : index
    %c0_1 = arith.constant 0 : index
    %0 = vector.load %arg1[%c0, %c0_0, %c0_1] : memref<1x32x256xf32, #tpu.memory_space<vmem>>, vector<1x32x256xf32>
    %cst = arith.constant dense<0.000000e+00> : vector<1x32xf32>
    %1 = vector.multi_reduction <add>, %0, %cst [2] : vector<1x32x256xf32> to vector<1x32xf32>
    %cst_2 = arith.constant 3.906250e-03 : f32
    %2 = vector.broadcast %cst_2 : f32 to vector<1x32xf32>
    %3 = arith.mulf %1, %2 : vector<1x32xf32>
    %c0_3 = arith.constant 0 : index
    %c0_4 = arith.constant 0 : index
    %4 = vector.load %arg2[%c0_3, %c0_4] : memref<32x8xf32, #tpu.memory_space<vmem>>, vector<32x8xf32>
    %c0_5 = arith.constant 0 : index
    %c0_6 = arith.constant 0 : index
    %5 = vector.load %arg3[%c0_5, %c0_6] : memref<1x8xf32, #tpu.memory_space<vmem>>, vector<1x8xf32>
    %c0_7 = arith.constant 0 : index
    %c0_8 = arith.constant 0 : index
    %6 = vector.load %arg4[%c0_7, %c0_8] : memref<8x32xf32, #tpu.memory_space<vmem>>, vector<8x32xf32>
    %c0_9 = arith.constant 0 : index
    %c0_10 = arith.constant 0 : index
    %7 = vector.load %arg5[%c0_9, %c0_10] : memref<1x32xf32, #tpu.memory_space<vmem>>, vector<1x32xf32>
    %8 = vector.shape_cast %3 : vector<1x32xf32> to vector<1x32x1xf32>
    %9 = vector.shape_cast %4 : vector<32x8xf32> to vector<1x32x8xf32>
    %10 = vector.broadcast %8 : vector<1x32x1xf32> to vector<1x32x8xf32>
    %11 = arith.mulf %10, %9 : vector<1x32x8xf32>
    %cst_11 = arith.constant dense<0.000000e+00> : vector<1x8xf32>
    %12 = vector.multi_reduction <add>, %11, %cst_11 [1] : vector<1x32x8xf32> to vector<1x8xf32>
    %13 = arith.addf %12, %5 : vector<1x8xf32>
    %cst_12 = arith.constant 0.000000e+00 : f32
    %14 = vector.broadcast %cst_12 : f32 to vector<1x8xf32>
    %15 = arith.maximumf %13, %14 : vector<1x8xf32>
    %16 = vector.shape_cast %15 : vector<1x8xf32> to vector<1x8x1xf32>
    %17 = vector.shape_cast %6 : vector<8x32xf32> to vector<1x8x32xf32>
    %18 = vector.broadcast %16 : vector<1x8x1xf32> to vector<1x8x32xf32>
    %19 = arith.mulf %18, %17 : vector<1x8x32xf32>
    %cst_13 = arith.constant dense<0.000000e+00> : vector<1x32xf32>
    %20 = vector.multi_reduction <add>, %19, %cst_13 [1] : vector<1x8x32xf32> to vector<1x32xf32>
    %21 = arith.addf %20, %7 : vector<1x32xf32>
    %22 = arith.negf %21 : vector<1x32xf32>
    %23 = math.exp %22 : vector<1x32xf32>
    %cst_14 = arith.constant 1.000000e+00 : f32
    %24 = vector.broadcast %cst_14 : f32 to vector<1x32xf32>
    %25 = arith.addf %24, %23 : vector<1x32xf32>
    %26 = arith.divf %24, %25 : vector<1x32xf32>
    %27 = vector.shape_cast %26 : vector<1x32xf32> to vector<1x32x1xf32>
    %28 = vector.broadcast %27 : vector<1x32x1xf32> to vector<1x32x256xf32>
    %29 = arith.mulf %0, %28 : vector<1x32x256xf32>
    %c0_15 = arith.constant 0 : index
    %c0_16 = arith.constant 0 : index
    %c0_17 = arith.constant 0 : index
    %30 = vector.load %arg6[%c0_15, %c0_16, %c0_17] : memref<1x32x256xf32, #tpu.memory_space<vmem>>, vector<1x32x256xf32>
    tpu.vector_store %arg6[%c0_15, %c0_16, %c0_17], %29 {strides = array<i32>} : memref<1x32x256xf32, #tpu.memory_space<vmem>>, vector<1x32x256xf32>,
    return
  }
  func.func @transform_0(%arg0: i32) -> (i32, i32, i32) {
    %c0_i32 = arith.constant 0 : i32
    %c0_i32_0 = arith.constant 0 : i32
    %c0_i32_1 = arith.constant 0 : i32
    return %arg0, %c0_i32, %c0_i32_0 : i32, i32, i32
  }
  func.func @transform_1(%arg0: i32) -> (i32, i32) {
    %c0_i32 = arith.constant 0 : i32
    %c0_i32_0 = arith.constant 0 : i32
    %c0_i32_1 = arith.constant 0 : i32
    return %c0_i32, %c0_i32_0 : i32, i32
  }
  func.func @transform_2(%arg0: i32) -> (i32, i32) {
    %c0_i32 = arith.constant 0 : i32
    %c0_i32_0 = arith.constant 0 : i32
    %c0_i32_1 = arith.constant 0 : i32
    return %c0_i32, %c0_i32_0 : i32, i32
  }
  func.func @transform_3(%arg0: i32) -> (i32, i32) {
    %c0_i32 = arith.constant 0 : i32
    %c0_i32_0 = arith.constant 0 : i32
    %c0_i32_1 = arith.constant 0 : i32
    return %c0_i32, %c0_i32_0 : i32, i32
  }
  func.func @transform_4(%arg0: i32) -> (i32, i32) {
    %c0_i32 = arith.constant 0 : i32
    %c0_i32_0 = arith.constant 0 : i32
    %c0_i32_1 = arith.constant 0 : i32
    return %c0_i32, %c0_i32_0 : i32, i32
  }
  func.func @transform_5(%arg0: i32) -> (i32, i32, i32) {
    %c0_i32 = arith.constant 0 : i32
    %c0_i32_0 = arith.constant 0 : i32
    %c0_i32_1 = arith.constant 0 : i32
    return %arg0, %c0_i32, %c0_i32_0 : i32, i32, i32
  }
}

</mosaic_0001>

<llo_original>
// kernel: tpu_custom_call.1
$region0: #{tpu_custom_call.1}
  #allocation0 [shape = 'u32[]', space=smem, size = 0x4, offset = 0x4, fixed_abs, tag = 'smem constant byte address 0x4 - core index']
  #allocation1 [shape = 'u32[144,128]{1,0:T(1,128)}', space=vmem, size = 0x12000, scoped, tag = 'internal scratch']
  %s0 = inlined_call_operand.hbm [shape: f32[2,32,256], index: 0, kind: input, shape index: {}]
  %s1 = inlined_call_operand.vmem [shape: f32[32,8], index: 1, kind: input, shape index: {}]
  %s2 = inlined_call_operand.vmem [shape: f32[1,8], index: 2, kind: input, shape index: {}]
  %s3 = inlined_call_operand.vmem [shape: f32[8,32], index: 3, kind: input, shape index: {}]
  %s4 = inlined_call_operand.vmem [shape: f32[1,32], index: 4, kind: input, shape index: {}]
  %s5 = inlined_call_operand.hbm [shape: f32[2,32,256], index: 5, kind: output, shape index: {}]
  %s6 = sld [smem:[#allocation0]]
  $region57: #{tpu_custom_call.1} parent=0
    _
  %s8 = ssub.s32 1, %s6
  %s9 = scalar_select 0, %s8, %s6
  $region1: #{tpu_custom_call.1} parent=0
    #allocation2 [shape = 'u8[65536]{0}', space=vmem, size = 0x10000, scoped, tag = 'input window, operand 0']
    #allocation3 [shape = 's32[2]{0}', space=sflag, size = 0x8, scoped, tag = 'scoped memory for tpu_custom_call.1']
    #allocation4 [shape = 's32[2]{0}', space=sflag, size = 0x8, scoped, tag = 'scoped memory for tpu_custom_call.1']
    #allocation5 [shape = 'u8[65536]{0}', space=vmem, size = 0x10000, scoped, tag = 'output window, operand 0']
    %10 = vsyncpa [#allocation3], 0
    %s11 = scalar_lea.sflag [#allocation3], 1
    %12 = vsyncpa %s11, 0
    %13 = vsyncpa [#allocation4], 0
    %s14 = scalar_lea.sflag [#allocation4], 1
    %15 = vsyncpa %s14, 0
    loop: start=0, step=1, limit=4
    $region2: #{tpu_custom_call.1} parent=1 // loop_pre_header
      _
    $region3: #{tpu_custom_call.1} parent=1 // loop_header
      %s17 = sphi 0, %s21
      %p18 = scmp.ge.s32.totalorder %s17, 4
      %s27 = sphi 0, %s29
      %s30 = sphi 0, %s27
      %s31 = sphi 0, %s30
      %s47 = sphi 0, %s31
      %s51 = sphi 0, %s51
      %s53 = sphi 0, %s51
      %s54 = sphi 0, %s53
      %s68 = sphi 0, %s54
      %s72 = sphi 0, %s72
      %s74 = sphi 0, %s72
      %s75 = sphi 0, %s74
      %s89 = sphi 0, %s75
      %s93 = sphi 0, %s93
      %s95 = sphi 0, %s93
      %s96 = sphi 0, %s95
      %s110 = sphi 0, %s96
      %s114 = sphi 0, %s114
      %s116 = sphi 0, %s114
      %s117 = sphi 0, %s116
      %s131 = sphi 0, %s117
      %s137 = sphi 0, %s139
      %s140 = sphi 0, %s137
      %s141 = sphi 0, %s140
      %s157 = sphi 0, %s141
    $region4: #{tpu_custom_call.1} parent=1 // loop_header_branch
      %20 = sbr.rel (%p18) target = $region8
    $region5: #{tpu_custom_call.1} parent=1 // loop_body
      %s22 = ssub.s32 %s17, 1
      %s23 = ssub.s32 %s17, 2
      %s24 = sadd.s32 %s17, 1
      %s25 = ssub.s32 %s17, %s24
      %p26 = scmp.eq.s32.totalorder %s25, 0
      %s28 = sadd.s32 %s27, 1
      %s29 = scalar_select %p26, %s27, %s28
      %p32 = pneg %p26
      %p33 = scmp.eq.s32.totalorder %s17, 1
      %p34 = por %p32, %p33
      %p35 = scmp.ne.s32.totalorder %s27, %s30
      %p36 = scmp.eq.s32.totalorder %s17, 0
      %p37 = por %p35, %p36
      %p38 = scmp.ne.s32.totalorder %s27, %s30
      %p39 = scmp.eq.s32.totalorder %s22, 1
      %p40 = por %p38, %p39
      %p41 = scmp.ne.s32.totalorder %s30, %s31
      %p42 = scmp.eq.s32.totalorder %s22, 0
      %p43 = por %p41, %p42
      %p44 = scmp.ne.s32.totalorder %s30, %s31
      %p45 = scmp.eq.s32.totalorder %s23, 1
      %p46 = por %p44, %p45
      %p48 = scmp.ne.s32.totalorder %s31, %s47
      %p49 = scmp.eq.s32.totalorder %s23, 0
      %p50 = por %p48, %p49
      %s52 = sadd.s32 %s51, 1
      %p55 = scmp.eq.s32.totalorder %s17, 1
      %p56 = scmp.ne.s32.totalorder %s51, %s53
      %p57 = scmp.eq.s32.totalorder %s17, 0
      %p58 = por %p56, %p57
      %p59 = scmp.ne.s32.totalorder %s51, %s53
      %p60 = scmp.eq.s32.totalorder %s22, 1
      %p61 = por %p59, %p60
      %p62 = scmp.ne.s32.totalorder %s53, %s54
      %p63 = scmp.eq.s32.totalorder %s22, 0
      %p64 = por %p62, %p63
      %p65 = scmp.ne.s32.totalorder %s53, %s54
      %p66 = scmp.eq.s32.totalorder %s23, 1
      %p67 = por %p65, %p66
      %p69 = scmp.ne.s32.totalorder %s54, %s68
      %p70 = scmp.eq.s32.totalorder %s23, 0
      %p71 = por %p69, %p70
      %s73 = sadd.s32 %s72, 1
      %p76 = scmp.eq.s32.totalorder %s17, 1
      %p77 = scmp.ne.s32.totalorder %s72, %s74
      %p78 = scmp.eq.s32.totalorder %s17, 0
      %p79 = por %p77, %p78
      %p80 = scmp.ne.s32.totalorder %s72, %s74
      %p81 = scmp.eq.s32.totalorder %s22, 1
      %p82 = por %p80, %p81
      %p83 = scmp.ne.s32.totalorder %s74, %s75
      %p84 = scmp.eq.s32.totalorder %s22, 0
      %p85 = por %p83, %p84
      %p86 = scmp.ne.s32.totalorder %s74, %s75
      %p87 = scmp.eq.s32.totalorder %s23, 1
      %p88 = por %p86, %p87
      %p90 = scmp.ne.s32.totalorder %s75, %s89
      %p91 = scmp.eq.s32.totalorder %s23, 0
      %p92 = por %p90, %p91
      %s94 = sadd.s32 %s93, 1
      %p97 = scmp.eq.s32.totalorder %s17, 1
      %p98 = scmp.ne.s32.totalorder %s93, %s95
      %p99 = scmp.eq.s32.totalorder %s17, 0
      %p100 = por %p98, %p99
      %p101 = scmp.ne.s32.totalorder %s93, %s95
      %p102 = scmp.eq.s32.totalorder %s22, 1
      %p103 = por %p101, %p102
      %p104 = scmp.ne.s32.totalorder %s95, %s96
      %p105 = scmp.eq.s32.totalorder %s22, 0
      %p106 = por %p104, %p105
      %p107 = scmp.ne.s32.totalorder %s95, %s96
      %p108 = scmp.eq.s32.totalorder %s23, 1
      %p109 = por %p107, %p108
      %p111 = scmp.ne.s32.totalorder %s96, %s110
      %p112 = scmp.eq.s32.totalorder %s23, 0
      %p113 = por %p111, %p112
      %s115 = sadd.s32 %s114, 1
      %p118 = scmp.eq.s32.totalorder %s17, 1
      %p119 = scmp.ne.s32.totalorder %s114, %s116
      %p120 = scmp.eq.s32.totalorder %s17, 0
      %p121 = por %p119, %p120
      %p122 = scmp.ne.s32.totalorder %s114, %s116
      %p123 = scmp.eq.s32.totalorder %s22, 1
      %p124 = por %p122, %p123
      %p125 = scmp.ne.s32.totalorder %s116, %s117
      %p126 = scmp.eq.s32.totalorder %s22, 0
      %p127 = por %p125, %p126
      %p128 = scmp.ne.s32.totalorder %s116, %s117
      %p129 = scmp.eq.s32.totalorder %s23, 1
      %p130 = por %p128, %p129
      %p132 = scmp.ne.s32.totalorder %s117, %s131
      %p133 = scmp.eq.s32.totalorder %s23, 0
      %p134 = por %p132, %p133
      %s135 = ssub.s32 %s17, %s24
      %p136 = scmp.eq.s32.totalorder %s135, 0
      %s138 = sadd.s32 %s137, 1
      %s139 = scalar_select %p136, %s137, %s138
      %p142 = pneg %p136
      %p143 = scmp.eq.s32.totalorder %s17, 1
      %p144 = por %p142, %p143
      %p145 = scmp.ne.s32.totalorder %s137, %s140
      %p146 = scmp.eq.s32.totalorder %s17, 0
      %p147 = por %p145, %p146
      %p148 = scmp.ne.s32.totalorder %s137, %s140
      %p149 = scmp.eq.s32.totalorder %s22, 1
      %p150 = por %p148, %p149
      %p151 = scmp.ne.s32.totalorder %s140, %s141
      %p152 = scmp.eq.s32.totalorder %s22, 0
      %p153 = por %p151, %p152
      %p154 = scmp.ne.s32.totalorder %s140, %s141
      %p155 = scmp.eq.s32.totalorder %s23, 1
      %p156 = por %p154, %p155
      %p158 = scmp.ne.s32.totalorder %s141, %s157
      %p159 = scmp.eq.s32.totalorder %s23, 0
      %p160 = por %p158, %p159
      %p161 = scmp.le.s32.totalorder 1, %s17
      %p162 = scmp.lt.s32.totalorder %s17, 3
      %p163 = pnand %p161, %p162
      %p164 = pneg %p163
      // Predicated region
      $region9: #{tpu_custom_call.1} parent=5 // pred_check
        _
      $region10: #{tpu_custom_call.1} parent=5 // pred_check_branch
        %166 = sbr.rel (%p163) target = $region12
      $region11: #{tpu_custom_call.1} parent=5 // pred_region
        %s167 = ssub.s32 %s17, 1
        // Predicated region
        $region13: #{tpu_custom_call.1} parent=11 // pred_check
          %p168 = pneg %p64
        $region14: #{tpu_custom_call.1} parent=11 // pred_check_branch
          %170 = sbr.rel (%p168) target = $region16
        $region15: #{tpu_custom_call.1} parent=11 // pred_region
          _
        $region16: #{tpu_custom_call.1} parent=11 // pred_fallthru
          _
        // Predicated region
        $region17: #{tpu_custom_call.1} parent=11 // pred_check
          %p171 = pneg %p85
        $region18: #{tpu_custom_call.1} parent=11 // pred_check_branch
          %173 = sbr.rel (%p171) target = $region20
        $region19: #{tpu_custom_call.1} parent=11 // pred_region
          _
        $region20: #{tpu_custom_call.1} parent=11 // pred_fallthru
          _
        // Predicated region
        $region21: #{tpu_custom_call.1} parent=11 // pred_check
          %p174 = pneg %p106
        $region22: #{tpu_custom_call.1} parent=11 // pred_check_branch
          %176 = sbr.rel (%p174) target = $region24
        $region23: #{tpu_custom_call.1} parent=11 // pred_region
          _
        $region24: #{tpu_custom_call.1} parent=11 // pred_fallthru
          _
        // Predicated region
        $region25: #{tpu_custom_call.1} parent=11 // pred_check
          %p177 = pneg %p127
        $region26: #{tpu_custom_call.1} parent=11 // pred_check_branch
          %179 = sbr.rel (%p177) target = $region28
        $region27: #{tpu_custom_call.1} parent=11 // pred_region
          _
        $region28: #{tpu_custom_call.1} parent=11 // pred_fallthru
          _
      $region12: #{tpu_custom_call.1} parent=5 // pred_fallthru
        _
      %p180 = scmp.lt.s32.totalorder %s17, 2
      // Predicated region
      $region29: #{tpu_custom_call.1} parent=5 // pred_check
        %p181 = pneg %p180
      $region30: #{tpu_custom_call.1} parent=5 // pred_check_branch
        %183 = sbr.rel (%p181) target = $region32
      $region31: #{tpu_custom_call.1} parent=5 // pred_region
        // Predicated region
        $region33: #{tpu_custom_call.1} parent=31 // pred_check
          %p184 = pneg %p37
        $region34: #{tpu_custom_call.1} parent=31 // pred_check_branch
          %186 = sbr.rel (%p184) target = $region36
        $region35: #{tpu_custom_call.1} parent=31 // pred_region
          %s187 = sand.u32 %s27, 1
          %s188 = scalar_lea.sflag [#allocation3], %s187
          %s189 = sand.u32 %s27, 1
          %s190 = smul.addr %s189, 64
          %s191 = scalar_lea.vmem [#allocation2], %s190
          %s193 = ssub.s32 1024, 1024
          %194 = vsyncadd %s188, %s193
          %s195 = smul.addr %s17, 8
          %s196 = smul.addr %s195, 128
          %s197 = scalar_lea.hbm %s0, %s196
          %s198 = sshll.u32 %s191, 4
          %s199 = int_to_ptr.vmem [resolvable:$true] %s198
          %204 = dma.hbm_to_vmem [thread:$0]  %s197, 1024, %s199, %s188, 256, 256, 16
        $region36: #{tpu_custom_call.1} parent=31 // pred_fallthru
          _
      $region32: #{tpu_custom_call.1} parent=5 // pred_fallthru
        _
      %p205 = scmp.le.s32.totalorder 1, %s17
      %p206 = scmp.lt.s32.totalorder %s17, 3
      %p207 = pnand %p205, %p206
      %p208 = pneg %p207
      // Predicated region
      $region37: #{tpu_custom_call.1} parent=5 // pred_check
        _
      $region38: #{tpu_custom_call.1} parent=5 // pred_check_branch
        %210 = sbr.rel (%p207) target = $region40
      $region39: #{tpu_custom_call.1} parent=5 // pred_region
        %s211 = ssub.s32 %s17, 1
        %s212 = sand.u32 %s30, 1
        %s213 = scalar_lea.sflag [#allocation3], %s212
        %s214 = sand.u32 %s30, 1
        %s215 = smul.addr %s214, 64
        %s216 = scalar_lea.vmem [#allocation2], %s215
        // Predicated region
        $region41: #{tpu_custom_call.1} parent=39 // pred_check
          %p217 = pneg %p43
        $region42: #{tpu_custom_call.1} parent=39 // pred_check_branch
          %219 = sbr.rel (%p217) target = $region44
        $region43: #{tpu_custom_call.1} parent=39 // pred_region
          %220 = dma.done %s213, 1024
        $region44: #{tpu_custom_call.1} parent=39 // pred_fallthru
          _
        %s221 = sand.u32 %s30, 1
        %s222 = scalar_lea.sflag [#allocation3], %s221
        %s223 = sand.u32 %s30, 1
        %s224 = smul.addr %s223, 64
        %s225 = scalar_lea.vmem [#allocation2], %s224
        %p226 = pneg %p43
        %p227 = pneg %p40
        %p228 = pneg %p64
        %p229 = pneg %p61
        %p230 = pneg %p85
        %p231 = pneg %p82
        %p232 = pneg %p106
        %p233 = pneg %p103
        %p234 = pneg %p127
        %p235 = pneg %p124
        %p236 = pneg %p153
        %p237 = pneg %p150
        %s238 = sand.u32 %s140, 1
        %s239 = scalar_lea.sflag [#allocation4], %s238
        %s240 = sand.u32 %s140, 1
        %s241 = smul.addr %s240, 64
        %s242 = scalar_lea.vmem [#allocation5], %s241
        %v243 = vld [vmem:[%s216] sm:$0xff]
        %v244 = vld [vmem:[%s216 + $0x8] sm:$0xff]
        %v245 = vld [vmem:[%s216 + $0x10] sm:$0xff]
        %v246 = vld [vmem:[%s216 + $0x18] sm:$0xff]
        %v247 = vld [vmem:[%s216 + $0x20] sm:$0xff]
        %v248 = vld [vmem:[%s216 + $0x28] sm:$0xff]
        %v249 = vld [vmem:[%s216 + $0x30] sm:$0xff]
        %v250 = vld [vmem:[%s216 + $0x38] sm:$0xff]
        %v251 = vadd.f32 %v243, %v244
        %252 = vadd.xlane.f32.xlu0 %v251
        %v253 = vpop.xlane.xlu0 %252
        %v254 = vadd.f32 %v245, %v246
        %255 = vadd.xlane.f32.xlu0 %v254
        %v256 = vpop.xlane.xlu0 %255
        %v257 = vadd.f32 %v247, %v248
        %258 = vadd.xlane.f32.xlu0 %v257
        %v259 = vpop.xlane.xlu0 %258
        %v260 = vadd.f32 %v249, %v250
        %261 = vadd.xlane.f32.xlu0 %v260
        %v262 = vpop.xlane.xlu0 %261
        %v263 = vmul.f32 %v253, 0.00390625
        %v264 = vmul.f32 %v256, 0.00390625
        %v265 = vmul.f32 %v259, 0.00390625
        %v266 = vmul.f32 %v262, 0.00390625
        %v267 = vld [vmem:[%s1] sm:$0xff]
        %v268 = vld [vmem:[%s1 + $0x8] sm:$0xff]
        %v269 = vld [vmem:[%s1 + $0x10] sm:$0xff]
        %v270 = vld [vmem:[%s1 + $0x18] sm:$0xff]
        %v271 = vld [vmem:[%s2] sm:$0x1]
        %v272 = vld [vmem:[%s3] sm:$0xff]
        %v273 = vld [vmem:[%s4] sm:$0x1]
        %v274 = vmul.f32 %v263, %v267
        %v275 = vmul.f32 %v264, %v268
        %v276 = vmul.f32 %v265, %v269
        %v277 = vmul.f32 %v266, %v270
        %vm278 = vcmask 64512
        %v279 = vsel %vm278, %v274, 0.0
        %v280 = vsel %vm278, %v275, 0.0
        %v281 = vadd.f32 %v279, %v280
        %v282 = vsel %vm278, %v276, 0.0
        %v283 = vadd.f32 %v281, %v282
        %v284 = vsel %vm278, %v277, 0.0
        %v285 = vadd.f32 %v283, %v284
        %v286 = vrot.slane %v285, 4
        %v287 = vadd.f32 %v285, %v286
        %v288 = vrot.slane %v287, 2
        %v289 = vadd.f32 %v287, %v288
        %v290 = vrot.slane %v289, 1
        %v291 = vadd.f32 %v289, %v290
        %v292 = vadd.f32 %v291, %v271
        %v293 = vmax.f32 %v292, 0.0
        %v294 = vlaneseq
        %v295 = vshrl.u32 %v294, 7
        %v296 = vsub.s32 0, %v295
        %v297 = vrot.slane %v293, %v296
        %299 = vbcast.lane.b32.xlu0 %v297, 256
        %v300 = vpop.permute.xlu0 %299
        %v301 = vmul.f32 %v300, %v272
        %vm302 = vcmask 261120
        %v303 = vsel %vm302, %v301, 0.0
        %v304 = vrot.slane %v303, 4
        %v305 = vadd.f32 %v303, %v304
        %v306 = vrot.slane %v305, 2
        %v307 = vadd.f32 %v305, %v306
        %v308 = vrot.slane %v307, 1
        %v309 = vadd.f32 %v307, %v308
        %v310 = vadd.f32 %v309, %v273
        %v311 = vxor.u32 %v310, 2147483648
        %v312 = vmul.f32 %v311, 1.442695
        %v313 = vpow.pop %v312
        %v314 = vadd.f32 %v313, 1.0
        %v315 = vrcp.pop %v314
        %v316 = vmul.f32 1.0, %v315
        %v317 = vlaneseq
        %v318 = vshrl.u32 %v317, 7
        %v319 = vsub.s32 0, %v318
        %v320 = vrot.slane %v316, %v319
        %322 = vbcast.lane.b32.xlu0 %v320, 256
        %v323 = vpop.permute.xlu0 %322
        %s325 = sor.u32 256, 8
        %326 = vbcast.lane.b32.xlu0 %v320, %s325
        %v327 = vpop.permute.xlu0 %326
        %s329 = sor.u32 256, 16
        %330 = vbcast.lane.b32.xlu0 %v320, %s329
        %v331 = vpop.permute.xlu0 %330
        %s333 = sor.u32 256, 24
        %334 = vbcast.lane.b32.xlu0 %v320, %s333
        %v335 = vpop.permute.xlu0 %334
        %v336 = vmul.f32 %v243, %v323
        %v337 = vmul.f32 %v244, %v323
        %v338 = vmul.f32 %v245, %v327
        %v339 = vmul.f32 %v246, %v327
        %v340 = vmul.f32 %v247, %v331
        %v341 = vmul.f32 %v248, %v331
        %v342 = vmul.f32 %v249, %v335
        %v343 = vmul.f32 %v250, %v335
        %344 = vst [vmem:[%s242] sm:$0xff] %v336
        %345 = vst [vmem:[%s242 + $0x8] sm:$0xff] %v337
        %346 = vst [vmem:[%s242 + $0x10] sm:$0xff] %v338
        %347 = vst [vmem:[%s242 + $0x18] sm:$0xff] %v339
        %348 = vst [vmem:[%s242 + $0x20] sm:$0xff] %v340
        %349 = vst [vmem:[%s242 + $0x28] sm:$0xff] %v341
        %350 = vst [vmem:[%s242 + $0x30] sm:$0xff] %v342
        %351 = vst [vmem:[%s242 + $0x38] sm:$0xff] %v343
        %s352 = sand.u32 %s140, 1
        %s353 = scalar_lea.sflag [#allocation4], %s352
        %s354 = sand.u32 %s140, 1
        %s355 = smul.addr %s354, 64
        %s356 = scalar_lea.vmem [#allocation5], %s355
        // Predicated region
        $region45: #{tpu_custom_call.1} parent=39 // pred_check
          %p357 = pneg %p150
        $region46: #{tpu_custom_call.1} parent=39 // pred_check_branch
          %359 = sbr.rel (%p357) target = $region48
        $region47: #{tpu_custom_call.1} parent=39 // pred_region
          %s361 = ssub.s32 1024, 1024
          %362 = vsyncadd %s353, %s361
          %s363 = smul.addr %s22, 8
          %s364 = smul.addr %s363, 128
          %s365 = scalar_lea.hbm %s5, %s364
          %s366 = sshll.u32 %s356, 4
          %s367 = int_to_ptr.vmem [resolvable:$true] %s366
          %372 = dma.vmem_to_hbm [thread:$0]  %s367, 1024, %s365, %s353, 256, 256, 16
        $region48: #{tpu_custom_call.1} parent=39 // pred_fallthru
          _
      $region40: #{tpu_custom_call.1} parent=5 // pred_fallthru
        _
      %p373 = scmp.le.s32.totalorder 2, %s17
      // Predicated region
      $region49: #{tpu_custom_call.1} parent=5 // pred_check
        %p374 = pneg %p373
      $region50: #{tpu_custom_call.1} parent=5 // pred_check_branch
        %376 = sbr.rel (%p374) target = $region52
      $region51: #{tpu_custom_call.1} parent=5 // pred_region
        %s377 = ssub.s32 %s17, 2
        // Predicated region
        $region53: #{tpu_custom_call.1} parent=51 // pred_check
          %p378 = pneg %p156
        $region54: #{tpu_custom_call.1} parent=51 // pred_check_branch
          %380 = sbr.rel (%p378) target = $region56
        $region55: #{tpu_custom_call.1} parent=51 // pred_region
          %s381 = sand.u32 %s141, 1
          %s382 = scalar_lea.sflag [#allocation4], %s381
          %s383 = sand.u32 %s141, 1
          %s384 = smul.addr %s383, 64
          %s385 = scalar_lea.vmem [#allocation5], %s384
          %386 = dma.done %s382, 1024
        $region56: #{tpu_custom_call.1} parent=51 // pred_fallthru
          _
      $region52: #{tpu_custom_call.1} parent=5 // pred_fallthru
        _
    $region6: #{tpu_custom_call.1} parent=1 // loop_footer
      %s21 = sadd.s32 1, %s17
    $region7: #{tpu_custom_call.1} parent=1 // loop_footer_branch
      %16 = sbr.rel target = $region3
    $region8: #{tpu_custom_call.1} parent=1 // loop_exit
      _
    %387 = vsyncpa [#allocation3], 1
    %s388 = scalar_lea.sflag [#allocation3], 1
    %389 = vsyncpa %s388, 1
    %390 = vsyncpa [#allocation4], 1
    %s391 = scalar_lea.sflag [#allocation4], 1
    %392 = vsyncpa %s391, 1

</llo_original>
